<compile_context>
chip_gen: v5e
topology: v5e:2x2
jax: 0.10.0
libtpu: 0.0.40
codegen_flags: <defaults>
</compile_context>

<pallas_src>
import functools

import jax
import jax.numpy as jnp
from jax import lax
from jax.experimental import pallas as pl
from jax.experimental.pallas import tpu as pltpu


def _round_up(v, m):
    return (v + m - 1) // m * m


def _vmem_budget_bytes():
    """Per-call VMEM working-set budget (double-buffered in+out tiles + f32 temps).

    Chosen to stay inside each generation's *default* scoped-VMEM limit, so no
    vmem_limit_bytes override is needed:
      v5e (16 MiB default)      -> 12 MiB budget
      v6e / v7x (32 MiB default) -> 24 MiB budget
    """
    try:
        kind = jax.devices()[0].device_kind.lower()
    except Exception:
        kind = ""
    if "v6" in kind or "v7" in kind:
        return 24 << 20
    return 12 << 20


# ----------------------------------------------------------------------------
# Kernel: p-norm normalization of one tile, reducing over `axis`.
#   2D path: tile (rows, C)      -> reduce over lanes    (axis=-1)
#   ND path: tile (1, C, s_tile) -> reduce over sublanes (axis=-2)
# Reduction in f32; scaling multiply kept in the input dtype for sub-32-bit inputs.
# ----------------------------------------------------------------------------
def _normalize_kernel(x_ref, o_ref, *, power, axis):
    x = x_ref[...]
    xf = x.astype(jnp.float32)
    if power == 2:
        s = jnp.sum(xf * xf, axis=axis, keepdims=True)
        scale = lax.rsqrt(s)                      # EUP rsqrt + VPU mul (no sqrt/div chain)
    else:
        s = jnp.sum(jnp.power(xf, power), axis=axis, keepdims=True)
        scale = jnp.power(s, -1.0 / power)
    # NOTE: no epsilon, matching the torch module exactly (all-zero row -> NaN).
    if x.dtype == jnp.float32:
        o_ref[...] = xf * scale
    else:
        o_ref[...] = (x * scale.astype(x.dtype)).astype(o_ref.dtype)


# ----------------------------------------------------------------------------
# 2D inputs (M, C): normalize each row over the lane axis.
# ----------------------------------------------------------------------------
def _normalize_2d(x, power):
    M, C = x.shape
    item = x.dtype.itemsize
    budget = _vmem_budget_bytes()

    # VMEM footprint per row: lane-padded width x (2x(in+out) double-buffered + f32 temp).
    lane_padded = _round_up(max(C, 128), 128)
    per_row = lane_padded * (2 * (item + item) + 4)
    tile_rows = max(8, (budget // per_row) // 8 * 8)
    # Keep >= 4 grid steps when rows allow it (v7x megacore sharding + DMA overlap).
    tile_rows = min(tile_rows, max(8, _round_up(pl.cdiv(M, 4), 8)))
    if tile_rows >= M:
        tile_rows = M                              # single block at full extent (always legal)
    grid = (pl.cdiv(M, tile_rows),)                # ragged last block: OOB writes dropped

    kernel = functools.partial(_normalize_kernel, power=power, axis=-1)
    cost = pl.CostEstimate(
        flops=3 * M * C,
        transcendentals=M,
        bytes_accessed=2 * M * C * item,
    )
    return pl.pallas_call(
        kernel,
        grid=grid,
        # Full-C block: legal for any C, reduction axis never sees garbage lanes.
        in_specs=[pl.BlockSpec((tile_rows, C), lambda i: (i, 0))],
        out_specs=pl.BlockSpec((tile_rows, C), lambda i: (i, 0)),
        out_shape=jax.ShapeDtypeStruct((M, C), x.dtype),
        compiler_params=pltpu.CompilerParams(dimension_semantics=("parallel",)),
        cost_estimate=cost,
    )(x)


# ----------------------------------------------------------------------------
# ND inputs (N, C, *spatial): normalize over the channel axis in native layout.
# Channels sit on the sublane axis, spatial positions on the lane axis.
# ----------------------------------------------------------------------------
def _normalize_nd(x, power):
    orig_shape = x.shape
    N, C = orig_shape[0], orig_shape[1]
    S = 1
    for d in orig_shape[2:]:
        S *= d
    x3 = x.reshape(N, C, S)                        # merge trailing dims: free for contiguous input
    item = x.dtype.itemsize
    budget = _vmem_budget_bytes()

    sub_padded = _round_up(max(C, 8), 8)           # VMEM pads sublanes to a multiple of 8
    per_col = sub_padded * (2 * (item + item) + 4)
    s_tile = max(128, (budget // per_col) // 128 * 128)
    if s_tile >= S:
        s_tile = S                                 # full extent (legal for any S)
    grid = (N, pl.cdiv(S, s_tile))                 # ragged last spatial block: OOB writes dropped

    kernel = functools.partial(_normalize_kernel, power=power, axis=-2)
    cost = pl.CostEstimate(
        flops=3 * N * C * S,
        transcendentals=N * S,
        bytes_accessed=2 * N * C * S * item,
    )
    out = pl.pallas_call(
        kernel,
        grid=grid,
        in_specs=[pl.BlockSpec((1, C, s_tile), lambda n, s: (n, 0, s))],
        out_specs=pl.BlockSpec((1, C, s_tile), lambda n, s: (n, 0, s)),
        out_shape=jax.ShapeDtypeStruct((N, C, S), x.dtype),
        compiler_params=pltpu.CompilerParams(dimension_semantics=("parallel", "parallel")),
        cost_estimate=cost,
    )(x3)
    return out.reshape(orig_shape)


def pallas_normalize(x, power=2):
    """Equivalent of torch Normalize(power).forward: normalize over axis 1."""
    if x.ndim < 2:
        raise ValueError("Normalize expects at least 2 dims (reduces over dim=1)")
    if x.ndim == 2:
        return _normalize_2d(x, power)
    return _normalize_nd(x, power)


# ----------------------------------------------------------------------------
if __name__ == "__main__":
    key = jax.random.PRNGKey(0)
    k1, k2, k3 = jax.random.split(key, 3)

    # (1) pooled feature vectors, the way Normalize is used in ModelWithGAN (l2norm(x))
    feat = jax.random.normal(k1, (8, 512), jnp.float32)
    # (2) low-dim features (low_dim=32): exercises the non-128-multiple lane path
    feat_low = jax.random.normal(k2, (4, 32), jnp.float32)
    # (3) NCHW feature map, normalized over the channel axis (dim=1), native layout
    fmap = jax.random.normal(k3, (2, 4, 16, 16), jnp.float32)

    def ref(x, power=2):
        norm = jnp.power(jnp.sum(jnp.power(x, power), axis=1, keepdims=True), 1.0 / power)
        return x / norm

    ok = True
    for x in (feat, feat_low, fmap):
        y = jax.block_until_ready(pallas_normalize(x, power=2))
        ok = ok and (y.shape == x.shape)
        ok = ok and bool(jnp.allclose(y, ref(x), rtol=2e-5, atol=1e-6))

    if ok:
        print("KERNEL_OK")
    else:
        print("MISMATCH")
</pallas_src>

<mosaic_0001>
module attributes {stable_mosaic.version = 11 : i64} {
  func.func @_normalize_kernel(%arg0: i32, %arg1: memref<8x512xf32, #tpu.memory_space<vmem>>, %arg2: memref<8x512xf32, #tpu.memory_space<vmem>>) attributes {dimension_semantics = [#tpu.dimension_semantics<parallel>], iteration_bounds = array<i64: 1>, scalar_prefetch = 0 : i64, scratch_operands = 0 : i64, tpu.core_type = #tpu.core_type<tc>, window_params = [{transform_indices = @transform_0, window_bounds = array<i64: 8, 512>}, {transform_indices = @transform_1, window_bounds = array<i64: 8, 512>}]} {
    %c0 = arith.constant 0 : index
    %c0_0 = arith.constant 0 : index
    %0 = vector.load %arg1[%c0, %c0_0] : memref<8x512xf32, #tpu.memory_space<vmem>>, vector<8x512xf32>
    %1 = arith.mulf %0, %0 : vector<8x512xf32>
    %cst = arith.constant dense<0.000000e+00> : vector<8xf32>
    %2 = vector.multi_reduction <add>, %1, %cst [1] : vector<8x512xf32> to vector<8xf32>
    %3 = vector.shape_cast %2 : vector<8xf32> to vector<8x1xf32>
    %4 = math.rsqrt %3 : vector<8x1xf32>
    %5 = vector.broadcast %4 : vector<8x1xf32> to vector<8x512xf32>
    %6 = arith.mulf %0, %5 : vector<8x512xf32>
    %c0_1 = arith.constant 0 : index
    %c0_2 = arith.constant 0 : index
    %7 = vector.load %arg2[%c0_1, %c0_2] : memref<8x512xf32, #tpu.memory_space<vmem>>, vector<8x512xf32>
    tpu.vector_store %arg2[%c0_1, %c0_2], %6 {strides = array<i32>} : memref<8x512xf32, #tpu.memory_space<vmem>>, vector<8x512xf32>,
    return
  }
  func.func @transform_0(%arg0: i32) -> (i32, i32) {
    %c0_i32 = arith.constant 0 : i32
    %c0_i32_0 = arith.constant 0 : i32
    return %arg0, %c0_i32 : i32, i32
  }
  func.func @transform_1(%arg0: i32) -> (i32, i32) {
    %c0_i32 = arith.constant 0 : i32
    %c0_i32_0 = arith.constant 0 : i32
    return %arg0, %c0_i32 : i32, i32
  }
}

</mosaic_0001>

<llo_original>
// kernel: tpu_custom_call.1
$region0: #{tpu_custom_call.1}
  #allocation0 [shape = 'u32[]', space=smem, size = 0x4, offset = 0x4, fixed_abs, tag = 'smem constant byte address 0x4 - core index']
  #allocation1 [shape = 'u32[72,128]{1,0:T(1,128)}', space=vmem, size = 0x9000, scoped, tag = 'internal scratch']
  %s0 = inlined_call_operand.hbm [shape: f32[8,512], index: 0, kind: input, shape index: {}]
  %s1 = inlined_call_operand.hbm [shape: f32[8,512], index: 1, kind: output, shape index: {}]
  %s2 = sld [smem:[#allocation0]]
  $region18: #{tpu_custom_call.1} parent=0
    _
  %s4 = ssub.s32 1, %s2
  %s5 = scalar_select 0, %s4, %s2
  $region1: #{tpu_custom_call.1} parent=0
    #allocation2 [shape = 'u8[16384]{0}', space=vmem, size = 0x4000, scoped, tag = 'input window, operand 0, single buffered']
    #allocation3 [shape = 's32[1]{0}', space=sflag, size = 0x4, scoped, tag = 'scoped memory for tpu_custom_call.1']
    #allocation4 [shape = 's32[1]{0}', space=sflag, size = 0x4, scoped, tag = 'scoped memory for tpu_custom_call.1']
    #allocation5 [shape = 'u8[16384]{0}', space=vmem, size = 0x4000, scoped, tag = 'output window, operand 0, single buffered']
    %6 = vsyncpa [#allocation3], 0
    %7 = vsyncpa [#allocation4], 0
    // Predicated region
    $region2: #{tpu_custom_call.1} parent=1 // pred_check
      _
    $region3: #{tpu_custom_call.1} parent=1 // pred_check_branch
      %9 = sbr.rel (0) target = $region5
    $region4: #{tpu_custom_call.1} parent=1 // pred_region
      %11 = vsyncadd [#allocation3], 0
      %s13 = sshll.u32 %s0, 4
      %s14 = int_to_ptr.hbm [resolvable:$true] %s13
      %s15 = sshll.u32 [#allocation2], 4
      %s16 = int_to_ptr.vmem [resolvable:$true] %s15
      %18 = dma.hbm_to_vmem [thread:$0]  %s14, 512, %s16, [#allocation3]
    $region5: #{tpu_custom_call.1} parent=1 // pred_fallthru
      _
    // Predicated region
    $region6: #{tpu_custom_call.1} parent=1 // pred_check
      _
    $region7: #{tpu_custom_call.1} parent=1 // pred_check_branch
      %20 = sbr.rel (0) target = $region9
    $region8: #{tpu_custom_call.1} parent=1 // pred_region
      %22 = dma.done [#allocation3], 512
    $region9: #{tpu_custom_call.1} parent=1 // pred_fallthru
      _
    %v23 = vld [vmem:[#allocation2] sm:$0xff]
    %v24 = vld [vmem:[#allocation2 + $0x8] sm:$0xff]
    %v25 = vld [vmem:[#allocation2 + $0x10] sm:$0xff]
    %v26 = vld [vmem:[#allocation2 + $0x18] sm:$0xff]
    %v27 = vmul.f32 %v23, %v23
    %v28 = vmul.f32 %v24, %v24
    %v29 = vmul.f32 %v25, %v25
    %v30 = vmul.f32 %v26, %v26
    %v31 = vadd.f32 %v27, %v28
    %v32 = vadd.f32 %v31, %v29
    %v33 = vadd.f32 %v32, %v30
    %34 = vadd.xlane.f32.xlu0 %v33
    %v35 = vpop.xlane.xlu0 %34
    %v36 = vrsqrt.pop %v35
    %v37 = vmul.f32 %v36, %v35
    %v38 = vmul.f32 %v37, %v36
    %v39 = vmul.f32 0.5, %v38
    %v40 = vsub.f32 1.5, %v39
    %v41 = vmul.f32 %v36, %v40
    %vm42 = vweird.f32 %v35
    %vm43 = vweird.f32 %v36
    %vm44 = vmor %vm42, %vm43
    %v45 = vsel %vm44, %v36, %v41
    %v46 = vmul.f32 %v23, %v45
    %v47 = vmul.f32 %v24, %v45
    %v48 = vmul.f32 %v25, %v45
    %v49 = vmul.f32 %v26, %v45
    %50 = vst [vmem:[#allocation5] sm:$0xff] %v46
    %51 = vst [vmem:[#allocation5 + $0x8] sm:$0xff] %v47
    %52 = vst [vmem:[#allocation5 + $0x10] sm:$0xff] %v48
    %53 = vst [vmem:[#allocation5 + $0x18] sm:$0xff] %v49
    // Predicated region
    $region10: #{tpu_custom_call.1} parent=1 // pred_check
      _
    $region11: #{tpu_custom_call.1} parent=1 // pred_check_branch
      %55 = sbr.rel (0) target = $region13
    $region12: #{tpu_custom_call.1} parent=1 // pred_region
      %57 = vsyncadd [#allocation4], 0
      %s59 = sshll.u32 [#allocation5], 4
      %s60 = int_to_ptr.vmem [resolvable:$true] %s59
      %s61 = sshll.u32 %s1, 4
      %s62 = int_to_ptr.hbm [resolvable:$true] %s61
      %64 = dma.vmem_to_hbm [thread:$0]  %s60, 512, %s62, [#allocation4]
    $region13: #{tpu_custom_call.1} parent=1 // pred_fallthru
      _
    // Predicated region
    $region14: #{tpu_custom_call.1} parent=1 // pred_check
      _
    $region15: #{tpu_custom_call.1} parent=1 // pred_check_branch
      %66 = sbr.rel (0) target = $region17
    $region16: #{tpu_custom_call.1} parent=1 // pred_region
      %68 = dma.done [#allocation4], 512
    $region17: #{tpu_custom_call.1} parent=1 // pred_fallthru
      _
    %69 = vsyncpa [#allocation3], 1
    %70 = vsyncpa [#allocation4], 1

</llo_original>
